<compile_context>
chip_gen: v5e
topology: v5e:2x2
jax: 0.10.0
libtpu: 0.0.40
codegen_flags: <defaults>
</compile_context>

<pallas_src>
import functools

import jax
import jax.numpy as jnp
from jax.experimental import pallas as pl
from jax.experimental.pallas import tpu as pltpu

LIFT_D = 1
IN_DIM = 2 + LIFT_D   # 3
OUT_DIM = 2


def _decoder_kernel(yt_ref, w1_ref, b1_ref, w2_ref, b2_ref, w3t_ref, b3_ref,
                    ot_ref):
    """Fused 3-layer MLP on a feature-major batch tile."""
    # Layer 1 on the VPU: three lane-broadcast FMAs replace a K=3 MXU pass.
    yt = yt_ref[...].astype(jnp.float32)                       # (3, tile)
    w1 = w1_ref[...]                                           # (H, 3) f32
    h1 = jnp.tanh(w1[:, 0:1] * yt[0:1, :]
                  + w1[:, 1:2] * yt[1:2, :]
                  + w1[:, 2:3] * yt[2:3, :]
                  + b1_ref[...])                               # (H, tile) f32

    # Layer 2: the single MXU pass.  Operands may be bf16 (v6e/v7x); the
    # accumulation, bias add and tanh stay in f32.
    h2 = jnp.tanh(
        jnp.dot(w2_ref[...], h1.astype(w2_ref.dtype),
                preferred_element_type=jnp.float32)
        + b2_ref[...])                                         # (H, tile) f32

    # Layer 3 (OUT_DIM == 2): VPU broadcast-mul + XLU sublane reduce instead
    # of a 2-wide MXU pass; two direct lane-dense row stores (no concatenate
    # relayout through the copy path).
    w3t = w3t_ref[...]                                         # (H, 2) f32
    o0 = jnp.sum(w3t[:, 0:1] * h2, axis=0, keepdims=True)      # (1, tile)
    o1 = jnp.sum(w3t[:, 1:2] * h2, axis=0, keepdims=True)      # (1, tile)
    ot_ref[0:1, :] = (o0 + b3_ref[0:1, :]).astype(ot_ref.dtype)
    ot_ref[1:2, :] = (o1 + b3_ref[1:2, :]).astype(ot_ref.dtype)


def _round_up(x, m):
    return (x + m - 1) // m * m


def _bf16_native_default():
    """bf16 matmul operands help on v6e/v7x (bf16-native MXU/VPU); on <= v5e
    the f32<->bf16 converts are pure extra VALU work, so default to f32."""
    try:
        kind = jax.devices()[0].device_kind.lower()
    except Exception:
        return False
    if any(v in kind for v in ("v2", "v3", "v4", "v5")):
        return False
    return "tpu" in kind


def _resident_spec(shape):
    """Weights/biases: constant index_map keeps them VMEM-resident across all
    grid steps; Buffered(1) drops the pointless second pipeline buffer (halves
    the weight VMEM footprint at large H — matters on v7x's 64 MiB VMEM)."""
    try:
        return pl.BlockSpec(shape, lambda i: (0, 0),
                            pipeline_mode=pl.Buffered(1))
    except TypeError:  # older jax without pipeline_mode on BlockSpec
        return pl.BlockSpec(shape, lambda i: (0, 0))


def decoder_forward_t(yt, params, *, tm=512, use_bf16=None,
                      vmem_limit_bytes=None):
    """Feature-major decoder: yt (3, N) f32 -> (2, N) f32.

    Keeping the feature-major layout end-to-end avoids the (N,3)<->(3,N)
    transpose HBM round-trips entirely.  `params` are in PyTorch layout:
    weights (out_features, in_features), biases (out_features,).
    """
    w1, b1, w2, b2, w3, b3 = params
    N = yt.shape[1]
    H = w1.shape[0]
    assert yt.shape[0] == IN_DIM and w1.shape == (H, IN_DIM)
    assert w2.shape == (H, H) and w3.shape == (OUT_DIM, H)
    assert tm % 128 == 0, "batch tile must be a multiple of 128 (lanes)"

    if use_bf16 is None:
        use_bf16 = _bf16_native_default()
    op_dtype = jnp.bfloat16 if use_bf16 else jnp.float32

    # Layer-1 input/weights stay f32 (layer 1 runs on the VPU); only the
    # layer-2 MXU operands are (optionally) bf16.  Layer 3 is VPU/XLU in f32.
    yt_c = yt.astype(jnp.float32)                       # (3, N)
    w1_c = w1.astype(jnp.float32)                       # (H, 3)
    w2_c = w2.astype(op_dtype)                          # (H, H)
    w3t_c = w3.T.astype(jnp.float32)                    # (H, 2)
    b1_c = b1.reshape(H, 1).astype(jnp.float32)
    b2_c = b2.reshape(H, 1).astype(jnp.float32)
    b3_c = b3.reshape(OUT_DIM, 1).astype(jnp.float32)

    # Lane-dense batch tile; no explicit padding (partial last block is masked
    # by Pallas).  Keeping h1/h2 live at (H, tile) f32 bounds tile <= 512 for
    # H = 32 before vreg spill; raise tm only with an in-kernel chunked loop.
    tile = min(tm, _round_up(N, 128))
    if N > 256:
        # Keep >= 2 grid steps so both v7x TensorCores get work under
        # dimension_semantics=("parallel",); costs ~0.35us extra on 1-TC chips.
        tile = min(tile, max(128, _round_up(pl.cdiv(N, 2), 128)))
    grid = (pl.cdiv(N, tile),)

    out_t = pl.pallas_call(
        _decoder_kernel,
        out_shape=jax.ShapeDtypeStruct((OUT_DIM, N), jnp.float32),
        grid_spec=pltpu.PrefetchScalarGridSpec(
            num_scalar_prefetch=0,
            grid=grid,
            in_specs=[
                pl.BlockSpec((IN_DIM, tile), lambda i: (0, i)),  # y^T tile
                _resident_spec((H, IN_DIM)),                     # W1
                _resident_spec((H, 1)),                          # b1
                _resident_spec((H, H)),                          # W2
                _resident_spec((H, 1)),                          # b2
                _resident_spec((H, OUT_DIM)),                    # W3^T
                _resident_spec((OUT_DIM, 1)),                    # b3
            ],
            out_specs=pl.BlockSpec((OUT_DIM, tile), lambda i: (0, i)),
        ),
        compiler_params=pltpu.CompilerParams(
            dimension_semantics=("parallel",),
            # Set explicitly (with Buffered(1) weights) for large H on v7x,
            # where scoped VMEM defaults to 32 MiB of 64 MiB physical.
            vmem_limit_bytes=vmem_limit_bytes),
    )(yt_c, w1_c, b1_c, w2_c, b2_c, w3t_c, b3_c)
    return out_t


def decoder_forward(y, params, *, tm=512, use_bf16=None, vmem_limit_bytes=None):
    """Batch-major convenience wrapper: y (N, 3) -> (N, 2).

    The two transposes here are layout plumbing only; call this inside the
    same jit as the surrounding computation (or stay feature-major with
    decoder_forward_t) so they fuse instead of being standalone dispatches.
    """
    out_t = decoder_forward_t(y.T, params, tm=tm, use_bf16=use_bf16,
                              vmem_limit_bytes=vmem_limit_bytes)
    return out_t.T


def init_decoder_params(key, n_hidden):
    """Match the PyTorch module: W ~ N(0, 0.1), b = 0 (PyTorch layout)."""
    k1, k2, k3 = jax.random.split(key, 3)
    std = 0.1
    w1 = std * jax.random.normal(k1, (n_hidden, IN_DIM), jnp.float32)
    b1 = jnp.zeros((n_hidden,), jnp.float32)
    w2 = std * jax.random.normal(k2, (n_hidden, n_hidden), jnp.float32)
    b2 = jnp.zeros((n_hidden,), jnp.float32)
    w3 = std * jax.random.normal(k3, (OUT_DIM, n_hidden), jnp.float32)
    b3 = jnp.zeros((OUT_DIM,), jnp.float32)
    return (w1, b1, w2, b2, w3, b3)


def decoder_reference(y, params):
    w1, b1, w2, b2, w3, b3 = params
    h1 = jnp.tanh(y @ w1.T + b1)
    h2 = jnp.tanh(h1 @ w2.T + b2)
    return h2 @ w3.T + b3


if __name__ == "__main__":
    key = jax.random.PRNGKey(0)
    k_param, k_small, k_big = jax.random.split(key, 3)

    n_hidden = 32
    params = init_decoder_params(k_param, n_hidden)

    # jit the batch-major wrapper so its layout transposes fuse with
    # neighbouring ops instead of being standalone dispatches.
    fwd_f32 = jax.jit(functools.partial(decoder_forward, use_bf16=False))
    fwd_bf16 = jax.jit(functools.partial(decoder_forward, use_bf16=True))
    fwd_auto = jax.jit(functools.partial(decoder_forward))  # generation default

    # 1) Small batch (N=16): single grid step, partial (masked) lane block, f32.
    y_small = jax.random.normal(k_small, (16, IN_DIM), jnp.float32)
    out_small = jax.block_until_ready(fwd_f32(y_small, params))
    ref_small = decoder_reference(y_small, params)
    assert out_small.shape == (16, OUT_DIM)
    assert jnp.allclose(out_small, ref_small, atol=1e-5, rtol=1e-5)

    # 2) Ragged larger batch (N=1000): >=2 grid steps, partial last block,
    #    no explicit pad op, f32.
    y_big = jax.random.normal(k_big, (1000, IN_DIM), jnp.float32)
    ref_big = decoder_reference(y_big, params)
    out_big = jax.block_until_ready(fwd_f32(y_big, params))
    assert out_big.shape == (1000, OUT_DIM)
    assert jnp.allclose(out_big, ref_big, atol=1e-5, rtol=1e-5)

    # 3) bf16 layer-2 MXU operands (v6e/v7x fast path); looser tolerance.
    out_bf16 = jax.block_until_ready(fwd_bf16(y_big, params))
    assert jnp.allclose(out_bf16, ref_big, atol=5e-2, rtol=5e-2)

    # 4) Generation-dependent default (f32 on <=v5e, bf16 on v6e/v7x).
    out_auto = jax.block_until_ready(fwd_auto(y_big, params))
    assert jnp.allclose(out_auto, ref_big, atol=5e-2, rtol=5e-2)

    # 5) Feature-major entry point (no wrapper transposes at all).
    out_t = jax.block_until_ready(
        jax.jit(functools.partial(decoder_forward_t, use_bf16=False))(
            y_big.T, params))
    assert out_t.shape == (OUT_DIM, 1000)
    assert jnp.allclose(out_t.T, ref_big, atol=1e-5, rtol=1e-5)

    print("KERNEL_OK")
</pallas_src>

<mosaic_0001>
module attributes {stable_mosaic.version = 11 : i64} {
  func.func @_decoder_kernel(%arg0: i32, %arg1: memref<3x128xf32, #tpu.memory_space<vmem>>, %arg2: memref<32x3xf32, #tpu.memory_space<vmem>>, %arg3: memref<32x1xf32, #tpu.memory_space<vmem>>, %arg4: memref<32x32xf32, #tpu.memory_space<vmem>>, %arg5: memref<32x1xf32, #tpu.memory_space<vmem>>, %arg6: memref<32x2xf32, #tpu.memory_space<vmem>>, %arg7: memref<2x1xf32, #tpu.memory_space<vmem>>, %arg8: memref<2x128xf32, #tpu.memory_space<vmem>>) attributes {dimension_semantics = [#tpu.dimension_semantics<parallel>], iteration_bounds = array<i64: 1>, scalar_prefetch = 0 : i64, scratch_operands = 0 : i64, tpu.core_type = #tpu.core_type<tc>, window_params = [{transform_indices = @transform_0, window_bounds = array<i64: 3, 128>}, {pipeline_mode = #tpu.pipeline_mode<synchronous>, transform_indices = @transform_1, window_bounds = array<i64: 32, 3>}, {pipeline_mode = #tpu.pipeline_mode<synchronous>, transform_indices = @transform_2, window_bounds = array<i64: 32, 1>}, {pipeline_mode = #tpu.pipeline_mode<synchronous>, transform_indices = @transform_3, window_bounds = array<i64: 32, 32>}, {pipeline_mode = #tpu.pipeline_mode<synchronous>, transform_indices = @transform_4, window_bounds = array<i64: 32, 1>}, {pipeline_mode = #tpu.pipeline_mode<synchronous>, transform_indices = @transform_5, window_bounds = array<i64: 32, 2>}, {pipeline_mode = #tpu.pipeline_mode<synchronous>, transform_indices = @transform_6, window_bounds = array<i64: 2, 1>}, {transform_indices = @transform_7, window_bounds = array<i64: 2, 128>}]} {
    %c0 = arith.constant 0 : index
    %c0_0 = arith.constant 0 : index
    %0 = vector.load %arg1[%c0, %c0_0] : memref<3x128xf32, #tpu.memory_space<vmem>>, vector<3x128xf32>
    %c0_1 = arith.constant 0 : index
    %c0_2 = arith.constant 0 : index
    %1 = vector.load %arg2[%c0_1, %c0_2] : memref<32x3xf32, #tpu.memory_space<vmem>>, vector<32x3xf32>
    %2 = vector.extract_strided_slice %1 {offsets = [0, 0], sizes = [32, 1], strides = [1, 1]} : vector<32x3xf32> to vector<32x1xf32>
    %3 = vector.extract_strided_slice %0 {offsets = [0, 0], sizes = [1, 128], strides = [1, 1]} : vector<3x128xf32> to vector<1x128xf32>
    %4 = vector.broadcast %2 : vector<32x1xf32> to vector<32x128xf32>
    %5 = vector.broadcast %3 : vector<1x128xf32> to vector<32x128xf32>
    %6 = arith.mulf %4, %5 : vector<32x128xf32>
    %7 = vector.extract_strided_slice %1 {offsets = [0, 1], sizes = [32, 1], strides = [1, 1]} : vector<32x3xf32> to vector<32x1xf32>
    %8 = vector.extract_strided_slice %0 {offsets = [1, 0], sizes = [1, 128], strides = [1, 1]} : vector<3x128xf32> to vector<1x128xf32>
    %9 = vector.broadcast %7 : vector<32x1xf32> to vector<32x128xf32>
    %10 = vector.broadcast %8 : vector<1x128xf32> to vector<32x128xf32>
    %11 = arith.mulf %9, %10 : vector<32x128xf32>
    %12 = arith.addf %6, %11 : vector<32x128xf32>
    %13 = vector.extract_strided_slice %1 {offsets = [0, 2], sizes = [32, 1], strides = [1, 1]} : vector<32x3xf32> to vector<32x1xf32>
    %14 = vector.extract_strided_slice %0 {offsets = [2, 0], sizes = [1, 128], strides = [1, 1]} : vector<3x128xf32> to vector<1x128xf32>
    %15 = vector.broadcast %13 : vector<32x1xf32> to vector<32x128xf32>
    %16 = vector.broadcast %14 : vector<1x128xf32> to vector<32x128xf32>
    %17 = arith.mulf %15, %16 : vector<32x128xf32>
    %18 = arith.addf %12, %17 : vector<32x128xf32>
    %c0_3 = arith.constant 0 : index
    %c0_4 = arith.constant 0 : index
    %19 = vector.load %arg3[%c0_3, %c0_4] : memref<32x1xf32, #tpu.memory_space<vmem>>, vector<32x1xf32>
    %20 = vector.broadcast %19 : vector<32x1xf32> to vector<32x128xf32>
    %21 = arith.addf %18, %20 : vector<32x128xf32>
    %22 = math.tanh %21 : vector<32x128xf32>
    %c0_5 = arith.constant 0 : index
    %c0_6 = arith.constant 0 : index
    %23 = vector.load %arg4[%c0_5, %c0_6] : memref<32x32xf32, #tpu.memory_space<vmem>>, vector<32x32xf32>
    %cst = arith.constant dense<0.000000e+00> : vector<32x128xf32>
    %24 = tpu.matmul %23, %22, %cst {dimension_numbers = #tpu.dot_dimension_numbers<[1], [0], [0], [1], [0, 0, 1, 1], [], []>} : vector<32x32xf32>, vector<32x128xf32>, vector<32x128xf32> -> vector<32x128xf32>
    %c0_7 = arith.constant 0 : index
    %c0_8 = arith.constant 0 : index
    %25 = vector.load %arg5[%c0_7, %c0_8] : memref<32x1xf32, #tpu.memory_space<vmem>>, vector<32x1xf32>
    %26 = vector.broadcast %25 : vector<32x1xf32> to vector<32x128xf32>
    %27 = arith.addf %24, %26 : vector<32x128xf32>
    %28 = math.tanh %27 : vector<32x128xf32>
    %c0_9 = arith.constant 0 : index
    %c0_10 = arith.constant 0 : index
    %29 = vector.load %arg6[%c0_9, %c0_10] : memref<32x2xf32, #tpu.memory_space<vmem>>, vector<32x2xf32>
    %30 = vector.extract_strided_slice %29 {offsets = [0, 0], sizes = [32, 1], strides = [1, 1]} : vector<32x2xf32> to vector<32x1xf32>
    %31 = vector.broadcast %30 : vector<32x1xf32> to vector<32x128xf32>
    %32 = arith.mulf %31, %28 : vector<32x128xf32>
    %cst_11 = arith.constant dense<0.000000e+00> : vector<128xf32>
    %33 = vector.multi_reduction <add>, %32, %cst_11 [0] : vector<32x128xf32> to vector<128xf32>
    %34 = vector.shape_cast %33 : vector<128xf32> to vector<1x128xf32>
    %35 = vector.extract_strided_slice %29 {offsets = [0, 1], sizes = [32, 1], strides = [1, 1]} : vector<32x2xf32> to vector<32x1xf32>
    %36 = vector.broadcast %35 : vector<32x1xf32> to vector<32x128xf32>
    %37 = arith.mulf %36, %28 : vector<32x128xf32>
    %cst_12 = arith.constant dense<0.000000e+00> : vector<128xf32>
    %38 = vector.multi_reduction <add>, %37, %cst_12 [0] : vector<32x128xf32> to vector<128xf32>
    %39 = vector.shape_cast %38 : vector<128xf32> to vector<1x128xf32>
    %c0_13 = arith.constant 0 : index
    %c0_14 = arith.constant 0 : index
    %40 = vector.load %arg7[%c0_13, %c0_14] : memref<2x1xf32, #tpu.memory_space<vmem>>, vector<1x1xf32>
    %41 = vector.broadcast %40 : vector<1x1xf32> to vector<1x128xf32>
    %42 = arith.addf %34, %41 : vector<1x128xf32>
    %c0_15 = arith.constant 0 : index
    %c0_16 = arith.constant 0 : index
    %43 = vector.load %arg8[%c0_15, %c0_16] : memref<2x128xf32, #tpu.memory_space<vmem>>, vector<1x128xf32>
    tpu.vector_store %arg8[%c0_15, %c0_16], %42 {strides = array<i32>} : memref<2x128xf32, #tpu.memory_space<vmem>>, vector<1x128xf32>,
    %c1 = arith.constant 1 : index
    %c0_17 = arith.constant 0 : index
    %44 = vector.load %arg7[%c1, %c0_17] : memref<2x1xf32, #tpu.memory_space<vmem>>, vector<1x1xf32>
    %45 = vector.broadcast %44 : vector<1x1xf32> to vector<1x128xf32>
    %46 = arith.addf %39, %45 : vector<1x128xf32>
    %c1_18 = arith.constant 1 : index
    %c0_19 = arith.constant 0 : index
    %47 = vector.load %arg8[%c1_18, %c0_19] : memref<2x128xf32, #tpu.memory_space<vmem>>, vector<1x128xf32>
    tpu.vector_store %arg8[%c1_18, %c0_19], %46 {strides = array<i32>} : memref<2x128xf32, #tpu.memory_space<vmem>>, vector<1x128xf32>,
    return
  }
  func.func @transform_0(%arg0: i32) -> (i32, i32) {
    %c0_i32 = arith.constant 0 : i32
    %c0_i32_0 = arith.constant 0 : i32
    return %c0_i32, %arg0 : i32, i32
  }
  func.func @transform_1(%arg0: i32) -> (i32, i32) {
    %c0_i32 = arith.constant 0 : i32
    %c0_i32_0 = arith.constant 0 : i32
    %c0_i32_1 = arith.constant 0 : i32
    return %c0_i32, %c0_i32_0 : i32, i32
  }
  func.func @transform_2(%arg0: i32) -> (i32, i32) {
    %c0_i32 = arith.constant 0 : i32
    %c0_i32_0 = arith.constant 0 : i32
    %c0_i32_1 = arith.constant 0 : i32
    return %c0_i32, %c0_i32_0 : i32, i32
  }
  func.func @transform_3(%arg0: i32) -> (i32, i32) {
    %c0_i32 = arith.constant 0 : i32
    %c0_i32_0 = arith.constant 0 : i32
    %c0_i32_1 = arith.constant 0 : i32
    return %c0_i32, %c0_i32_0 : i32, i32
  }
  func.func @transform_4(%arg0: i32) -> (i32, i32) {
    %c0_i32 = arith.constant 0 : i32
    %c0_i32_0 = arith.constant 0 : i32
    %c0_i32_1 = arith.constant 0 : i32
    return %c0_i32, %c0_i32_0 : i32, i32
  }
  func.func @transform_5(%arg0: i32) -> (i32, i32) {
    %c0_i32 = arith.constant 0 : i32
    %c0_i32_0 = arith.constant 0 : i32
    %c0_i32_1 = arith.constant 0 : i32
    return %c0_i32, %c0_i32_0 : i32, i32
  }
  func.func @transform_6(%arg0: i32) -> (i32, i32) {
    %c0_i32 = arith.constant 0 : i32
    %c0_i32_0 = arith.constant 0 : i32
    %c0_i32_1 = arith.constant 0 : i32
    return %c0_i32, %c0_i32_0 : i32, i32
  }
  func.func @transform_7(%arg0: i32) -> (i32, i32) {
    %c0_i32 = arith.constant 0 : i32
    %c0_i32_0 = arith.constant 0 : i32
    return %c0_i32, %arg0 : i32, i32
  }
}

</mosaic_0001>

<llo_original>
// kernel: decoder_forward.1
$region0: #{decoder_forward.1}
  #allocation0 [shape = 'u32[]', space=smem, size = 0x4, offset = 0x4, fixed_abs, tag = 'smem constant byte address 0x4 - core index']
  #allocation1 [shape = 'u32[72,128]{1,0:T(1,128)}', space=vmem, size = 0x9000, scoped, tag = 'internal scratch']
  %s0 = inlined_call_operand.vmem [shape: f32[3,16], index: 0, kind: input, shape index: {}]
  %s1 = inlined_call_operand.vmem [shape: f32[32,3], index: 1, kind: input, shape index: {}]
  %s2 = inlined_call_operand.vmem [shape: f32[32,1], index: 2, kind: input, shape index: {}]
  %s3 = inlined_call_operand.vmem [shape: f32[32,32], index: 3, kind: input, shape index: {}]
  %s4 = inlined_call_operand.vmem [shape: f32[32,1], index: 4, kind: input, shape index: {}]
  %s5 = inlined_call_operand.vmem [shape: f32[32,2], index: 5, kind: input, shape index: {}]
  %s6 = inlined_call_operand.vmem [shape: f32[2,1], index: 6, kind: input, shape index: {}]
  %s7 = inlined_call_operand.hbm [shape: f32[2,16], index: 7, kind: output, shape index: {}]
  %s8 = sld [smem:[#allocation0]]
  $region38: #{decoder_forward.1} parent=0
    _
  %s10 = ssub.s32 1, %s8
  %s11 = scalar_select 0, %s10, %s8
  $region1: #{decoder_forward.1} parent=0
    #allocation2 [shape = 'u8[1024]{0}', space=vmem, size = 0x400, scoped, tag = 'output window, operand 0, single buffered']
    #allocation3 [shape = 's32[1]{0}', space=sflag, size = 0x4, scoped, tag = 'scoped memory for decoder_forward.1']
    %12 = vsyncpa [#allocation3], 0
    // Predicated region
    $region2: #{decoder_forward.1} parent=1 // pred_check
      _
    $region3: #{decoder_forward.1} parent=1 // pred_check_branch
      %14 = sbr.rel (0) target = $region5
    $region4: #{decoder_forward.1} parent=1 // pred_region
      _
    $region5: #{decoder_forward.1} parent=1 // pred_fallthru
      _
    // Predicated region
    $region6: #{decoder_forward.1} parent=1 // pred_check
      _
    $region7: #{decoder_forward.1} parent=1 // pred_check_branch
      %16 = sbr.rel (0) target = $region9
    $region8: #{decoder_forward.1} parent=1 // pred_region
      _
    $region9: #{decoder_forward.1} parent=1 // pred_fallthru
      _
    // Predicated region
    $region10: #{decoder_forward.1} parent=1 // pred_check
      _
    $region11: #{decoder_forward.1} parent=1 // pred_check_branch
      %18 = sbr.rel (0) target = $region13
    $region12: #{decoder_forward.1} parent=1 // pred_region
      _
    $region13: #{decoder_forward.1} parent=1 // pred_fallthru
      _
    // Predicated region
    $region14: #{decoder_forward.1} parent=1 // pred_check
      _
    $region15: #{decoder_forward.1} parent=1 // pred_check_branch
      %20 = sbr.rel (0) target = $region17
    $region16: #{decoder_forward.1} parent=1 // pred_region
      _
    $region17: #{decoder_forward.1} parent=1 // pred_fallthru
      _
    // Predicated region
    $region18: #{decoder_forward.1} parent=1 // pred_check
      _
    $region19: #{decoder_forward.1} parent=1 // pred_check_branch
      %22 = sbr.rel (0) target = $region21
    $region20: #{decoder_forward.1} parent=1 // pred_region
      _
    $region21: #{decoder_forward.1} parent=1 // pred_fallthru
      _
    // Predicated region
    $region22: #{decoder_forward.1} parent=1 // pred_check
      _
    $region23: #{decoder_forward.1} parent=1 // pred_check_branch
      %24 = sbr.rel (0) target = $region25
    $region24: #{decoder_forward.1} parent=1 // pred_region
      _
    $region25: #{decoder_forward.1} parent=1 // pred_fallthru
      _
    // Predicated region
    $region26: #{decoder_forward.1} parent=1 // pred_check
      _
    $region27: #{decoder_forward.1} parent=1 // pred_check_branch
      %26 = sbr.rel (0) target = $region29
    $region28: #{decoder_forward.1} parent=1 // pred_region
      _
    $region29: #{decoder_forward.1} parent=1 // pred_fallthru
      _
    %v27 = vld [vmem:[%s0] sm:$0x7]
    %v28 = vld [vmem:[%s1] sm:$0xff]
    %v29 = vld [vmem:[%s1 + $0x8] sm:$0xff]
    %v30 = vld [vmem:[%s1 + $0x10] sm:$0xff]
    %v31 = vld [vmem:[%s1 + $0x18] sm:$0xff]
    %33 = vset.pattern.permute.xlu0 0
    %34 = vperm.xlu0 %33, %v28
    %v35 = vpop.permute.xlu0 %34
    %38 = vset.pattern.permute.xlu0 0
    %39 = vperm.xlu0 %38, %v29
    %v40 = vpop.permute.xlu0 %39
    %43 = vset.pattern.permute.xlu0 0
    %44 = vperm.xlu0 %43, %v30
    %v45 = vpop.permute.xlu0 %44
    %48 = vset.pattern.permute.xlu0 0
    %49 = vperm.xlu0 %48, %v31
    %v50 = vpop.permute.xlu0 %49
    %v52 = vperm.slane %v27, 0
    %v53 = vmul.f32 %v35, %v52
    %v54 = vmul.f32 %v40, %v52
    %v55 = vmul.f32 %v45, %v52
    %v56 = vmul.f32 %v50, %v52
    %57 = vset.pattern.permute.xlu0 1
    %58 = vperm.xlu0 %57, %v28
    %v59 = vpop.permute.xlu0 %58
    %61 = vset.pattern.permute.xlu0 1
    %62 = vperm.xlu0 %61, %v29
    %v63 = vpop.permute.xlu0 %62
    %65 = vset.pattern.permute.xlu0 1
    %66 = vperm.xlu0 %65, %v30
    %v67 = vpop.permute.xlu0 %66
    %69 = vset.pattern.permute.xlu0 1
    %70 = vperm.xlu0 %69, %v31
    %v71 = vpop.permute.xlu0 %70
    %v73 = vperm.slane %v27, 1
    %v74 = vmul.f32 %v59, %v73
    %v75 = vmul.f32 %v63, %v73
    %v76 = vmul.f32 %v67, %v73
    %v77 = vmul.f32 %v71, %v73
    %v78 = vadd.f32 %v53, %v74
    %v79 = vadd.f32 %v54, %v75
    %v80 = vadd.f32 %v55, %v76
    %v81 = vadd.f32 %v56, %v77
    %82 = vset.pattern.permute.xlu0 2
    %83 = vperm.xlu0 %82, %v28
    %v84 = vpop.permute.xlu0 %83
    %86 = vset.pattern.permute.xlu0 2
    %87 = vperm.xlu0 %86, %v29
    %v88 = vpop.permute.xlu0 %87
    %90 = vset.pattern.permute.xlu0 2
    %91 = vperm.xlu0 %90, %v30
    %v92 = vpop.permute.xlu0 %91
    %94 = vset.pattern.permute.xlu0 2
    %95 = vperm.xlu0 %94, %v31
    %v96 = vpop.permute.xlu0 %95
    %v98 = vperm.slane %v27, 2
    %v99 = vmul.f32 %v84, %v98
    %v100 = vmul.f32 %v88, %v98
    %v101 = vmul.f32 %v92, %v98
    %v102 = vmul.f32 %v96, %v98
    %v103 = vadd.f32 %v78, %v99
    %v104 = vadd.f32 %v79, %v100
    %v105 = vadd.f32 %v80, %v101
    %v106 = vadd.f32 %v81, %v102
    %v107 = vld [vmem:[%s2] sm:$0xff]
    %v108 = vld [vmem:[%s2 + $0x8] sm:$0xff]
    %v109 = vld [vmem:[%s2 + $0x10] sm:$0xff]
    %v110 = vld [vmem:[%s2 + $0x18] sm:$0xff]
    %112 = vset.pattern.permute.xlu0 0
    %113 = vperm.xlu0 %112, %v107
    %v114 = vpop.permute.xlu0 %113
    %117 = vset.pattern.permute.xlu0 0
    %118 = vperm.xlu0 %117, %v108
    %v119 = vpop.permute.xlu0 %118
    %122 = vset.pattern.permute.xlu0 0
    %123 = vperm.xlu0 %122, %v109
    %v124 = vpop.permute.xlu0 %123
    %127 = vset.pattern.permute.xlu0 0
    %128 = vperm.xlu0 %127, %v110
    %v129 = vpop.permute.xlu0 %128
    %v131 = vadd.f32 %v103, %v114
    %v132 = vadd.f32 %v104, %v119
    %v133 = vadd.f32 %v105, %v124
    %v134 = vadd.f32 %v106, %v129
    %v135 = vtanh.pop %v131
    %v136 = vtanh.pop %v132
    %v137 = vtanh.pop %v133
    %v138 = vtanh.pop %v134
    %v139 = vld [vmem:[%s3] sm:$0xff]
    %v140 = vld [vmem:[%s3 + $0x8] sm:$0xff]
    %v141 = vld [vmem:[%s3 + $0x10] sm:$0xff]
    %v142 = vld [vmem:[%s3 + $0x18] sm:$0xff]
    %v143 = vld [vmem:[%s4] sm:$0xff]
    %v144 = vld [vmem:[%s4 + $0x8] sm:$0xff]
    %v145 = vld [vmem:[%s4 + $0x10] sm:$0xff]
    %v146 = vld [vmem:[%s4 + $0x18] sm:$0xff]
    %148 = vset.pattern.permute.xlu0 0
    %149 = vperm.xlu0 %148, %v143
    %v150 = vpop.permute.xlu0 %149
    %153 = vset.pattern.permute.xlu0 0
    %154 = vperm.xlu0 %153, %v144
    %v155 = vpop.permute.xlu0 %154
    %158 = vset.pattern.permute.xlu0 0
    %159 = vperm.xlu0 %158, %v145
    %v160 = vpop.permute.xlu0 %159
    %163 = vset.pattern.permute.xlu0 0
    %164 = vperm.xlu0 %163, %v146
    %v165 = vpop.permute.xlu0 %164
    %vm167 = vcmask 261120
    %v169 = vsel %vm167, %v139, 0
    %v172 = vsel %vm167, %v140, 0
    %v175 = vsel %vm167, %v141, 0
    %v178 = vsel %vm167, %v142, 0
    %180 = vmatpush.msra.mxu0 0.0
    %181 = vmatpush.msra.mxu0 0.0
    %182 = vmatpush.msra.mxu0 0.0
    %183 = vmatpush.msra.mxu0 0.0
    %184 = vmatpush.msra.mxu0 0.0
    %185 = vmatpush.msra.mxu0 0.0
    %186 = vmatpush.msra.mxu0 0.0
    %187 = vmatpush.msra.mxu0 0.0
    %188 = vmatpush.msra.mxu0 0.0
    %189 = vmatpush.msra.mxu0 0.0
    %190 = vmatpush.msra.mxu0 0.0
    %191 = vmatpush.msra.mxu0 0.0
    %192 = vmatpush.msra.mxu0 %v138
    %193 = vmatpush.msra.mxu0 %v137
    %194 = vmatpush.msra.mxu0 %v136
    %195 = vmatpush.msra.mxu0 %v135
    %196 = vmatmul.f32.gmra.mxu0 %v169
    %v197 = vpop.f32.mrf.mxu0
    %v198 = vadd.f32 %v150, %v197
    %199 = vmatmul.f32.gmra.mxu0 %v172
    %v200 = vpop.f32.mrf.mxu0
    %v201 = vadd.f32 %v155, %v200
    %202 = vmatmul.f32.gmra.mxu0 %v175
    %v203 = vpop.f32.mrf.mxu0
    %v204 = vadd.f32 %v160, %v203
    %205 = vmatmul.f32.gmra.mxu0 %v178
    %v206 = vpop.f32.mrf.mxu0
    %v207 = vadd.f32 %v165, %v206
    %208 = vdwg.mxu0
    %v209 = vtanh.pop %v198
    %v210 = vtanh.pop %v201
    %v211 = vtanh.pop %v204
    %v212 = vtanh.pop %v207
    %v213 = vld [vmem:[%s5] sm:$0xff]
    %v214 = vld [vmem:[%s5 + $0x8] sm:$0xff]
    %v215 = vld [vmem:[%s5 + $0x10] sm:$0xff]
    %v216 = vld [vmem:[%s5 + $0x18] sm:$0xff]
    %218 = vset.pattern.permute.xlu0 0
    %219 = vperm.xlu0 %218, %v213
    %v220 = vpop.permute.xlu0 %219
    %223 = vset.pattern.permute.xlu0 0
    %224 = vperm.xlu0 %223, %v214
    %v225 = vpop.permute.xlu0 %224
    %228 = vset.pattern.permute.xlu0 0
    %229 = vperm.xlu0 %228, %v215
    %v230 = vpop.permute.xlu0 %229
    %233 = vset.pattern.permute.xlu0 0
    %234 = vperm.xlu0 %233, %v216
    %v235 = vpop.permute.xlu0 %234
    %v237 = vmul.f32 %v220, %v209
    %v238 = vmul.f32 %v225, %v210
    %v239 = vmul.f32 %v230, %v211
    %v240 = vmul.f32 %v235, %v212
    %v241 = vadd.f32 %v237, %v238
    %v242 = vadd.f32 %v241, %v239
    %v243 = vadd.f32 %v242, %v240
    %v244 = vrot.slane %v243, 4
    %v245 = vadd.f32 %v243, %v244
    %v246 = vrot.slane %v245, 2
    %v247 = vadd.f32 %v245, %v246
    %v248 = vrot.slane %v247, 1
    %v249 = vadd.f32 %v247, %v248
    %250 = vset.pattern.permute.xlu0 1
    %251 = vperm.xlu0 %250, %v213
    %v252 = vpop.permute.xlu0 %251
    %254 = vset.pattern.permute.xlu0 1
    %255 = vperm.xlu0 %254, %v214
    %v256 = vpop.permute.xlu0 %255
    %258 = vset.pattern.permute.xlu0 1
    %259 = vperm.xlu0 %258, %v215
    %v260 = vpop.permute.xlu0 %259
    %262 = vset.pattern.permute.xlu0 1
    %263 = vperm.xlu0 %262, %v216
    %v264 = vpop.permute.xlu0 %263
    %v266 = vmul.f32 %v252, %v209
    %v267 = vmul.f32 %v256, %v210
    %v268 = vmul.f32 %v260, %v211
    %v269 = vmul.f32 %v264, %v212
    %v270 = vadd.f32 %v266, %v267
    %v271 = vadd.f32 %v270, %v268
    %v272 = vadd.f32 %v271, %v269
    %v273 = vrot.slane %v272, 4
    %v274 = vadd.f32 %v272, %v273
    %v275 = vrot.slane %v274, 2
    %v276 = vadd.f32 %v274, %v275
    %v277 = vrot.slane %v276, 1
    %v278 = vadd.f32 %v276, %v277
    %v279 = vld [vmem:[%s6] sm:$0x1]
    %281 = vset.pattern.permute.xlu0 0
    %282 = vperm.xlu0 %281, %v279
    %v283 = vpop.permute.xlu0 %282
    %v285 = vadd.f32 %v249, %v283
    %286 = vst [vmem:[#allocation2] sm:$0x1] %v285
    %v287 = vld [vmem:[%s6 + $0x1] sm:$0x1]
    %289 = vset.pattern.permute.xlu0 0
    %290 = vperm.xlu0 %289, %v287
    %v291 = vpop.permute.xlu0 %290
    %v293 = vadd.f32 %v278, %v291
    %294 = vst [vmem:[#allocation2 + $0x1] sm:$0x1] %v293
    // Predicated region
    $region30: #{decoder_forward.1} parent=1 // pred_check
      _
    $region31: #{decoder_forward.1} parent=1 // pred_check_branch
      %296 = sbr.rel (0) target = $region33
    $region32: #{decoder_forward.1} parent=1 // pred_region
      %298 = vsyncadd [#allocation3], 0
      %s300 = sshll.u32 [#allocation2], 4
      %s301 = int_to_ptr.vmem [resolvable:$true] %s300
      %s302 = sshll.u32 %s7, 4
      %s303 = int_to_ptr.hbm [resolvable:$true] %s302
      %305 = dma.vmem_to_hbm [thread:$0]  %s301, 32, %s303, [#allocation3]
    $region33: #{decoder_forward.1} parent=1 // pred_fallthru
      _
    // Predicated region
    $region34: #{decoder_forward.1} parent=1 // pred_check
      _
    $region35: #{decoder_forward.1} parent=1 // pred_check_branch
      %307 = sbr.rel (0) target = $region37
    $region36: #{decoder_forward.1} parent=1 // pred_region
      %309 = dma.done [#allocation3], 32
    $region37: #{decoder_forward.1} parent=1 // pred_fallthru
      _
    %310 = vsyncpa [#allocation3], 1

</llo_original>
